<compile_context>
chip_gen: v7x
topology: tpu7x:2x2x1
jax: 0.10.0
libtpu: 0.0.40
codegen_flags: <defaults>
</compile_context>

<pallas_src>
import functools

import jax
import jax.numpy as jnp
from jax import lax
from jax.experimental import pallas as pl
from jax.experimental.pallas import tpu as pltpu


_NEG_BIG = -1e30   # logit assigned to rows beyond the sequence end (ragged tile)


def _utter_linear_kernel(feat_ref, mask_ref, w_att_ref, w_cls_ref, b_cls_ref,
                         out_ref, m_sc, l_sc, acc_sc,
                         *, t_tile, seq_len, compute_dtype, use_mxu):
    """One (batch, time-tile) grid step: SAP online-softmax pooling + classifier."""
    t = pl.program_id(1)

    @pl.when(t == 0)
    def _init():
        m_sc[...] = jnp.full_like(m_sc, -jnp.inf)
        l_sc[...] = jnp.zeros_like(l_sc)
        acc_sc[...] = jnp.zeros_like(acc_sc)

    # Ragged last tile handled in-kernel (no host-side feature pad): rows with
    # global index >= seq_len were never written by the DMA and may hold
    # garbage/NaN, so zero them before they can touch logits or the accumulator.
    row = t * t_tile + lax.broadcasted_iota(jnp.int32, (t_tile, 1), 0)
    valid = row < seq_len                                          # (Tt, 1)

    f = jnp.tanh(feat_ref[0].astype(compute_dtype))                # (Tt, D)
    f = jnp.where(valid, f, jnp.zeros((), compute_dtype))

    if use_mxu:
        # bf16 path (v6e/v7x): D-reduction on the otherwise-idle MXU,
        # f32 accumulation.  w_att_ref is a (D, 1) column here.
        logits = jnp.dot(f, w_att_ref[...],
                         preferred_element_type=jnp.float32)       # (Tt, 1)
    else:
        # f32 path (exact; v5e has no bf16 VPU/EUP): VPU mul + lane reduce.
        # w_att_ref is a (1, D) row here.
        logits = jnp.sum(f * w_att_ref[...], axis=-1, keepdims=True)
    # Additive mask (SAP bias folded in on the host); ragged rows -> -1e30.
    logits = jnp.where(valid, logits + mask_ref[0], _NEG_BIG)      # (Tt, 1) f32

    # Online softmax over the streamed T axis; statistics always in f32.
    m_prev = m_sc[...]                                             # (1, 1)
    m_new = jnp.maximum(m_prev, jnp.max(logits, axis=0, keepdims=True))
    alpha = jnp.exp(m_prev - m_new)                                # (1, 1)
    p = jnp.exp(logits - m_new)                                    # (Tt, 1) f32
    l_sc[...] = alpha * l_sc[...] + jnp.sum(p, axis=0, keepdims=True)
    if use_mxu:
        # T-weighted sum p^T @ f on the MXU (f32 accumulate).
        contrib = lax.dot_general(
            p.astype(compute_dtype), f,
            dimension_numbers=(((0,), (0,)), ((), ())),
            preferred_element_type=jnp.float32)                    # (1, D)
    else:
        # VPU mul + sublane reduce (exact f32; fine on HBM-bound v5e/v6e).
        contrib = jnp.sum(f * p, axis=0, keepdims=True)            # (1, D)
    acc_sc[...] = alpha * acc_sc[...] + contrib
    m_sc[...] = m_new

    @pl.when(t == pl.num_programs(1) - 1)
    def _finalize():
        # NOTE: approx=True (EUP vrcp) gives ~1e-3-level relative error; switch
        # to approx=False if exact parity with the PyTorch reference is needed.
        inv_l = pl.reciprocal(l_sc[...], approx=True)
        pooled = acc_sc[...] * inv_l                               # (1, D) f32
        pred = jnp.dot(pooled, w_cls_ref[...],
                       preferred_element_type=jnp.float32) + b_cls_ref[...]
        out_ref[...] = pred[None].astype(out_ref.dtype)            # (1, 1, C)


def _lane_padded_bytes(rows, cols, itemsize=4):
    """Physical VMEM footprint of a (rows, cols) tile after (8, 128) padding."""
    return (pl.cdiv(rows, 8) * 8) * (pl.cdiv(cols, 128) * 128) * itemsize


def _vmem_budget_bytes():
    """Generation-aware working-set budget (review: ~48 MiB on 128-MiB-VMEM
    v5e/v6e, ~24 MiB on 64-MiB-VMEM v7x)."""
    try:
        cap = getattr(pltpu.get_tpu_info(), "vmem_capacity_bytes", None)
    except Exception:
        cap = None
    if cap is None:
        cap = 64 << 20                       # conservative (v7x-sized) fallback
    return (48 << 20) if cap >= (100 << 20) else (24 << 20)


def _choose_t_tile(T, D, C, feat_itemsize, compute_itemsize, vmem_budget,
                   *, max_tile=4096):
    """Largest sublane-aligned time-tile whose working set fits `vmem_budget`.

    Counts the physical (lane-padded) size of the (t, 1) mask / logits / p
    tiles (each row costs a full 128-lane f32 vreg row) plus two tile-sized
    compute-dtype temps, per the perf review's VMEM-accounting feedback.
    """
    fixed = (_lane_padded_bytes(D, 1)            # SAP weight (column layout)
             + _lane_padded_bytes(1, D)          # SAP weight (row layout)
             + _lane_padded_bytes(D, C)          # classifier weight (f32)
             + 3 * _lane_padded_bytes(1, C)      # classifier bias + 2 out bufs
             + _lane_padded_bytes(1, D)          # acc scratch
             + 2 * _lane_padded_bytes(1, 1)      # m, l scratch
             + (1 << 20))                        # Mosaic-internal scratch slack
    lane_sparse_rows = 6                         # 2x mask bufs, logits, p, iota, valid
    per_row = (D * (2 * feat_itemsize            # 2 pipelined feature buffers
                    + 2 * compute_itemsize)      # tanh(f) + one compiler temp
               + lane_sparse_rows * 128 * 4)
    avail = max(vmem_budget - fixed, 8 * per_row)
    t = int(avail // per_row)
    t = max(8, min(max_tile, (t // 8) * 8))      # sublane-aligned
    if t >= T:
        t = T                                    # single full-sequence tile
    return t, per_row, fixed


def utter_linear_forward(feature, att_mask, w_att, b_att, w_cls, b_cls,
                         *, t_tile=None):
    """UtterLinear forward (SAP pooling fused with the linear classifier).

    feature : (B, T, D)  hidden features; f32 or bf16 (bf16 halves the HBM
                         stream and enables the MXU/bf16 elementwise path)
    att_mask: (B, T)     additive (finite) attention-logit mask, 0 = valid frame
    w_att   : (1, D), b_att: (1,)   nn.Linear(D, 1) of SelfAttentionPooling
    w_cls   : (C, D), b_cls: (C,)   nn.Linear(D, C) of UtteranceLevel_Linear
    returns : (B, C) class logits (float32)
    """
    B, T, D = feature.shape
    C = w_cls.shape[0]
    feat_itemsize = jnp.dtype(feature.dtype).itemsize
    compute_dtype = jnp.bfloat16 if feature.dtype == jnp.bfloat16 else jnp.float32
    compute_itemsize = jnp.dtype(compute_dtype).itemsize
    use_mxu = compute_dtype == jnp.bfloat16

    budget = _vmem_budget_bytes()
    auto_tile, per_row, fixed = _choose_t_tile(
        T, D, C, feat_itemsize, compute_itemsize, budget)
    if t_tile is None:
        t_tile = auto_tile
    else:
        t_tile = int(t_tile)
        t_tile = T if t_tile >= T else max(8, (t_tile // 8) * 8)
    nt = pl.cdiv(T, t_tile)            # ragged last tile is masked in-kernel

    # Host-side layout plumbing only (no feature copy, no compute hoisting):
    #  * SAP bias folded into the tiny additive mask; kept as (B, T, 1) so T
    #    sits on sublanes, matching the in-kernel (Tt, 1) logit layout.
    #  * classifier weight pre-transposed to (D, C) for a plain in-kernel dot.
    mask3 = (att_mask.astype(jnp.float32)
             + b_att.reshape(()).astype(jnp.float32))[..., None]       # (B, T, 1)
    if use_mxu:
        w_att2 = w_att.reshape(D, 1).astype(compute_dtype)             # (D, 1)
    else:
        w_att2 = w_att.reshape(1, D).astype(jnp.float32)               # (1, D)
    w_cls2 = jnp.transpose(w_cls).astype(jnp.float32)                  # (D, C)
    b_cls2 = b_cls.reshape(1, C).astype(jnp.float32)                   # (1, C)

    # Explicit scoped-VMEM limit: >= working-set estimate, <= generation budget
    # plus headroom (stays well under v7x's 64 MiB physical VMEM).
    est = fixed + per_row * t_tile
    vmem_limit = int(min(max(est + (8 << 20), 16 << 20), budget + (16 << 20)))

    kernel = functools.partial(_utter_linear_kernel, t_tile=t_tile, seq_len=T,
                               compute_dtype=compute_dtype, use_mxu=use_mxu)

    grid_spec = pltpu.PrefetchScalarGridSpec(
        num_scalar_prefetch=0,
        grid=(B, nt),                                 # reduction (T) axis last
        in_specs=[
            pl.BlockSpec((1, t_tile, D), lambda b, t: (b, t, 0)),   # feature
            pl.BlockSpec((1, t_tile, 1), lambda b, t: (b, t, 0)),   # mask (+bias)
            pl.BlockSpec(w_att2.shape, lambda b, t: (0, 0)),        # SAP weight
            pl.BlockSpec((D, C), lambda b, t: (0, 0)),              # classifier W^T
            pl.BlockSpec((1, C), lambda b, t: (0, 0)),              # classifier b
        ],
        out_specs=pl.BlockSpec((1, 1, C), lambda b, t: (b, 0, 0)),
        scratch_shapes=[
            pltpu.VMEM((1, 1), jnp.float32),    # running max  m
            pltpu.VMEM((1, 1), jnp.float32),    # running denom l
            pltpu.VMEM((1, D), jnp.float32),    # running weighted sum
        ],
    )

    # B is the megacore-parallel axis; with B == 1 on v7x one TensorCore idles
    # (fix would be splitting T across cores with partial (m, l, acc) + combine).
    out = pl.pallas_call(
        kernel,
        out_shape=jax.ShapeDtypeStruct((B, 1, C), jnp.float32),
        grid_spec=grid_spec,
        compiler_params=pltpu.CompilerParams(
            dimension_semantics=("parallel", "arbitrary"),
            vmem_limit_bytes=vmem_limit),
    )(feature, mask3, w_att2, w_cls2, b_cls2)
    return out[:, 0, :]


def utter_linear_reference(feature, att_mask, w_att, b_att, w_cls, b_cls):
    f = jnp.tanh(feature.astype(jnp.float32))
    logits = jnp.einsum("btd,d->bt", f, w_att.reshape(-1).astype(jnp.float32))
    logits = logits + b_att.reshape(()).astype(jnp.float32)
    logits = logits + att_mask.astype(jnp.float32)
    att = jax.nn.softmax(logits, axis=-1)[..., None]
    pooled = jnp.sum(f * att, axis=1)                                # (B, D)
    return pooled @ w_cls.astype(jnp.float32).T + b_cls.astype(jnp.float32)


if __name__ == "__main__":
    B, T, D, C = 2, 200, 256, 32   # batch, frames, hidden dim, class count

    key = jax.random.PRNGKey(0)
    k_feat, k_wa, k_ba, k_wc, k_bc = jax.random.split(key, 5)

    feature = jax.random.normal(k_feat, (B, T, D), dtype=jnp.float32)
    # additive logit mask from lengths: 0 for valid frames, -1e4 for padding
    valid_len = jnp.array([T, T // 2], dtype=jnp.int32)
    pos = jnp.arange(T)[None, :]
    att_mask = jnp.where(pos < valid_len[:, None], 0.0, -1e4).astype(jnp.float32)

    w_att = jax.random.normal(k_wa, (1, D), dtype=jnp.float32) * 0.1
    b_att = jax.random.normal(k_ba, (1,), dtype=jnp.float32) * 0.1
    w_cls = jax.random.normal(k_wc, (C, D), dtype=jnp.float32) * 0.1
    b_cls = jax.random.normal(k_bc, (C,), dtype=jnp.float32) * 0.1

    ref_f32 = utter_linear_reference(feature, att_mask, w_att, b_att, w_cls, b_cls)

    # f32 / exact VPU path: streamed tiles, ragged last tile masked in-kernel.
    out_tiled = utter_linear_forward(feature, att_mask, w_att, b_att,
                                     w_cls, b_cls, t_tile=64)
    # f32, auto-sized tile (single tile at this toy size).
    out_auto = utter_linear_forward(feature, att_mask, w_att, b_att, w_cls, b_cls)

    # bf16 feature stream (half HBM bytes) -> bf16 elementwise + MXU path.
    feature_bf16 = feature.astype(jnp.bfloat16)
    ref_bf16 = utter_linear_reference(feature_bf16, att_mask, w_att, b_att,
                                      w_cls, b_cls)
    out_bf16_tiled = utter_linear_forward(feature_bf16, att_mask, w_att, b_att,
                                          w_cls, b_cls, t_tile=64)
    out_bf16_auto = utter_linear_forward(feature_bf16, att_mask, w_att, b_att,
                                         w_cls, b_cls)

    jax.block_until_ready((out_tiled, out_auto, out_bf16_tiled, out_bf16_auto))

    checks = [
        ("f32 t_tile=64", out_tiled, ref_f32, 1e-3, 1e-3),
        ("f32 auto", out_auto, ref_f32, 1e-3, 1e-3),
        ("bf16 t_tile=64", out_bf16_tiled, ref_bf16, 5e-2, 5e-2),
        ("bf16 auto", out_bf16_auto, ref_bf16, 5e-2, 5e-2),
    ]
    for name, out, ref, atol, rtol in checks:
        assert out.shape == (B, C), (name, out.shape)
        err = float(jnp.max(jnp.abs(out - ref)))
        assert jnp.allclose(out, ref, atol=atol, rtol=rtol), (name, err)
    print("KERNEL_OK")
</pallas_src>

<mosaic_0001>
module attributes {stable_mosaic.version = 11 : i64} {
  func.func @_utter_linear_kernel(%arg0: i32, %arg1: i32, %arg2: memref<1x64x256xf32, #tpu.memory_space<vmem>>, %arg3: memref<1x64x1xf32, #tpu.memory_space<vmem>>, %arg4: memref<1x256xf32, #tpu.memory_space<vmem>>, %arg5: memref<256x32xf32, #tpu.memory_space<vmem>>, %arg6: memref<1x32xf32, #tpu.memory_space<vmem>>, %arg7: memref<1x1x32xf32, #tpu.memory_space<vmem>>, %arg8: memref<1x1xf32, #tpu.memory_space<vmem>>, %arg9: memref<1x1xf32, #tpu.memory_space<vmem>>, %arg10: memref<1x256xf32, #tpu.memory_space<vmem>>) attributes {dimension_semantics = [#tpu.dimension_semantics<parallel>, #tpu.dimension_semantics<arbitrary>], iteration_bounds = array<i64: 2, 4>, scalar_prefetch = 0 : i64, scratch_operands = 3 : i64, tpu.core_type = #tpu.core_type<tc>, window_params = [{transform_indices = @transform_0, window_bounds = array<i64: 1, 64, 256>}, {transform_indices = @transform_1, window_bounds = array<i64: 1, 64, 1>}, {pipeline_mode = #tpu.pipeline_mode<synchronous>, transform_indices = @transform_2, window_bounds = array<i64: 1, 256>}, {pipeline_mode = #tpu.pipeline_mode<synchronous>, transform_indices = @transform_3, window_bounds = array<i64: 256, 32>}, {pipeline_mode = #tpu.pipeline_mode<synchronous>, transform_indices = @transform_4, window_bounds = array<i64: 1, 32>}, {transform_indices = @transform_5, window_bounds = array<i64: 1, 1, 32>}]} {
    %c0_i32 = arith.constant 0 : i32
    %0 = arith.cmpi eq, %arg1, %c0_i32 : i32
    %1 = arith.extui %0 : i1 to i32
    %c0_i32_0 = arith.constant 0 : i32
    %2 = arith.cmpi ne, %1, %c0_i32_0 : i32
    scf.if %2 {
      %cst_26 = arith.constant 0xFF800000 : f32
      %54 = vector.broadcast %cst_26 : f32 to vector<1x1xf32>
      %c0_27 = arith.constant 0 : index
      %c0_28 = arith.constant 0 : index
      %55 = vector.load %arg8[%c0_27, %c0_28] : memref<1x1xf32, #tpu.memory_space<vmem>>, vector<1x1xf32>
      tpu.vector_store %arg8[%c0_27, %c0_28], %54 {strides = array<i32>} : memref<1x1xf32, #tpu.memory_space<vmem>>, vector<1x1xf32>,
      %cst_29 = arith.constant 0.000000e+00 : f32
      %56 = vector.broadcast %cst_29 : f32 to vector<1x1xf32>
      %c0_30 = arith.constant 0 : index
      %c0_31 = arith.constant 0 : index
      %57 = vector.load %arg9[%c0_30, %c0_31] : memref<1x1xf32, #tpu.memory_space<vmem>>, vector<1x1xf32>
      tpu.vector_store %arg9[%c0_30, %c0_31], %56 {strides = array<i32>} : memref<1x1xf32, #tpu.memory_space<vmem>>, vector<1x1xf32>,
      %cst_32 = arith.constant 0.000000e+00 : f32
      %58 = vector.broadcast %cst_32 : f32 to vector<1x256xf32>
      %c0_33 = arith.constant 0 : index
      %c0_34 = arith.constant 0 : index
      %59 = vector.load %arg10[%c0_33, %c0_34] : memref<1x256xf32, #tpu.memory_space<vmem>>, vector<1x256xf32>
      tpu.vector_store %arg10[%c0_33, %c0_34], %58 {strides = array<i32>} : memref<1x256xf32, #tpu.memory_space<vmem>>, vector<1x256xf32>,
    } else {
    }
    %c64_i32 = arith.constant 64 : i32
    %3 = arith.muli %arg1, %c64_i32 : i32
    %4 = tpu.iota {dimensions = array<i32: 0>} : vector<64x1xi32>
    %5 = vector.broadcast %3 : i32 to vector<64x1xi32>
    %6 = arith.addi %5, %4 : vector<64x1xi32>
    %c200_i32 = arith.constant 200 : i32
    %7 = vector.broadcast %c200_i32 : i32 to vector<64x1xi32>
    %8 = arith.cmpi slt, %6, %7 : vector<64x1xi32>
    %c0 = arith.constant 0 : index
    %c0_1 = arith.constant 0 : index
    %c0_2 = arith.constant 0 : index
    %9 = vector.load %arg2[%c0, %c0_1, %c0_2] : memref<1x64x256xf32, #tpu.memory_space<vmem>>, vector<1x64x256xf32>
    %10 = vector.shape_cast %9 : vector<1x64x256xf32> to vector<64x256xf32>
    %11 = math.tanh %10 : vector<64x256xf32>
    %cst = arith.constant 0.000000e+00 : f32
    %12 = vector.shape_cast %8 : vector<64x1xi1> to vector<64x1xi1>
    %13 = vector.broadcast %12 : vector<64x1xi1> to vector<64x256xi1>
    %14 = vector.broadcast %cst : f32 to vector<64x256xf32>
    %15 = arith.select %13, %11, %14 : vector<64x256xi1>, vector<64x256xf32>
    %c0_3 = arith.constant 0 : index
    %c0_4 = arith.constant 0 : index
    %16 = vector.load %arg4[%c0_3, %c0_4] : memref<1x256xf32, #tpu.memory_space<vmem>>, vector<1x256xf32>
    %17 = vector.broadcast %16 : vector<1x256xf32> to vector<64x256xf32>
    %18 = arith.mulf %15, %17 : vector<64x256xf32>
    %cst_5 = arith.constant dense<0.000000e+00> : vector<64xf32>
    %19 = vector.multi_reduction <add>, %18, %cst_5 [1] : vector<64x256xf32> to vector<64xf32>
    %20 = vector.shape_cast %19 : vector<64xf32> to vector<64x1xf32>
    %c0_6 = arith.constant 0 : index
    %c0_7 = arith.constant 0 : index
    %c0_8 = arith.constant 0 : index
    %21 = vector.load %arg3[%c0_6, %c0_7, %c0_8] : memref<1x64x1xf32, #tpu.memory_space<vmem>>, vector<1x64x1xf32>
    %22 = vector.shape_cast %21 : vector<1x64x1xf32> to vector<64x1xf32>
    %23 = arith.addf %20, %22 : vector<64x1xf32>
    %cst_9 = arith.constant -1.000000e+30 : f32
    %24 = vector.broadcast %cst_9 : f32 to vector<64x1xf32>
    %25 = arith.select %8, %23, %24 : vector<64x1xi1>, vector<64x1xf32>
    %c0_10 = arith.constant 0 : index
    %c0_11 = arith.constant 0 : index
    %26 = vector.load %arg8[%c0_10, %c0_11] : memref<1x1xf32, #tpu.memory_space<vmem>>, vector<1x1xf32>
    %cst_12 = arith.constant dense<0xFF800000> : vector<1xf32>
    %27 = vector.multi_reduction <maximumf>, %25, %cst_12 [0] : vector<64x1xf32> to vector<1xf32>
    %28 = vector.shape_cast %27 : vector<1xf32> to vector<1x1xf32>
    %29 = arith.maximumf %26, %28 : vector<1x1xf32>
    %30 = arith.subf %26, %29 : vector<1x1xf32>
    %31 = math.exp %30 : vector<1x1xf32>
    %32 = vector.broadcast %29 : vector<1x1xf32> to vector<64x1xf32>
    %33 = arith.subf %25, %32 : vector<64x1xf32>
    %34 = math.exp %33 : vector<64x1xf32>
    %c0_13 = arith.constant 0 : index
    %c0_14 = arith.constant 0 : index
    %35 = vector.load %arg9[%c0_13, %c0_14] : memref<1x1xf32, #tpu.memory_space<vmem>>, vector<1x1xf32>
    %36 = arith.mulf %31, %35 : vector<1x1xf32>
    %cst_15 = arith.constant dense<0.000000e+00> : vector<1xf32>
    %37 = vector.multi_reduction <add>, %34, %cst_15 [0] : vector<64x1xf32> to vector<1xf32>
    %38 = vector.shape_cast %37 : vector<1xf32> to vector<1x1xf32>
    %39 = arith.addf %36, %38 : vector<1x1xf32>
    %c0_16 = arith.constant 0 : index
    %c0_17 = arith.constant 0 : index
    %40 = vector.load %arg9[%c0_16, %c0_17] : memref<1x1xf32, #tpu.memory_space<vmem>>, vector<1x1xf32>
    tpu.vector_store %arg9[%c0_16, %c0_17], %39 {strides = array<i32>} : memref<1x1xf32, #tpu.memory_space<vmem>>, vector<1x1xf32>,
    %41 = vector.broadcast %34 : vector<64x1xf32> to vector<64x256xf32>
    %42 = arith.mulf %15, %41 : vector<64x256xf32>
    %cst_18 = arith.constant dense<0.000000e+00> : vector<256xf32>
    %43 = vector.multi_reduction <add>, %42, %cst_18 [0] : vector<64x256xf32> to vector<256xf32>
    %44 = vector.shape_cast %43 : vector<256xf32> to vector<1x256xf32>
    %c0_19 = arith.constant 0 : index
    %c0_20 = arith.constant 0 : index
    %45 = vector.load %arg10[%c0_19, %c0_20] : memref<1x256xf32, #tpu.memory_space<vmem>>, vector<1x256xf32>
    %46 = vector.broadcast %31 : vector<1x1xf32> to vector<1x256xf32>
    %47 = arith.mulf %46, %45 : vector<1x256xf32>
    %48 = arith.addf %47, %44 : vector<1x256xf32>
    %c0_21 = arith.constant 0 : index
    %c0_22 = arith.constant 0 : index
    %49 = vector.load %arg10[%c0_21, %c0_22] : memref<1x256xf32, #tpu.memory_space<vmem>>, vector<1x256xf32>
    tpu.vector_store %arg10[%c0_21, %c0_22], %48 {strides = array<i32>} : memref<1x256xf32, #tpu.memory_space<vmem>>, vector<1x256xf32>,
    %c0_23 = arith.constant 0 : index
    %c0_24 = arith.constant 0 : index
    %50 = vector.load %arg8[%c0_23, %c0_24] : memref<1x1xf32, #tpu.memory_space<vmem>>, vector<1x1xf32>
    tpu.vector_store %arg8[%c0_23, %c0_24], %29 {strides = array<i32>} : memref<1x1xf32, #tpu.memory_space<vmem>>, vector<1x1xf32>,
    %c3_i32 = arith.constant 3 : i32
    %51 = arith.cmpi eq, %arg1, %c3_i32 : i32
    %52 = arith.extui %51 : i1 to i32
    %c0_i32_25 = arith.constant 0 : i32
    %53 = arith.cmpi ne, %52, %c0_i32_25 : i32
    scf.if %53 {
      %c0_26 = arith.constant 0 : index
      %c0_27 = arith.constant 0 : index
      %54 = vector.load %arg9[%c0_26, %c0_27] : memref<1x1xf32, #tpu.memory_space<vmem>>, vector<1x1xf32>
      %55 = tpu.reciprocal %54 {approx = true} : vector<1x1xf32> -> vector<1x1xf32>
      %c0_28 = arith.constant 0 : index
      %c0_29 = arith.constant 0 : index
      %56 = vector.load %arg10[%c0_28, %c0_29] : memref<1x256xf32, #tpu.memory_space<vmem>>, vector<1x256xf32>
      %57 = vector.broadcast %55 : vector<1x1xf32> to vector<1x256xf32>
      %58 = arith.mulf %56, %57 : vector<1x256xf32>
      %c0_30 = arith.constant 0 : index
      %c0_31 = arith.constant 0 : index
      %59 = vector.load %arg5[%c0_30, %c0_31] : memref<256x32xf32, #tpu.memory_space<vmem>>, vector<256x32xf32>
      %cst_32 = arith.constant dense<0.000000e+00> : vector<1x32xf32>
      %60 = tpu.matmul %58, %59, %cst_32 {dimension_numbers = #tpu.dot_dimension_numbers<[1], [0], [0], [1], [0, 0, 1, 1], [], []>} : vector<1x256xf32>, vector<256x32xf32>, vector<1x32xf32> -> vector<1x32xf32>
      %c0_33 = arith.constant 0 : index
      %c0_34 = arith.constant 0 : index
      %61 = vector.load %arg6[%c0_33, %c0_34] : memref<1x32xf32, #tpu.memory_space<vmem>>, vector<1x32xf32>
      %62 = arith.addf %60, %61 : vector<1x32xf32>
      %63 = vector.shape_cast %62 : vector<1x32xf32> to vector<1x1x32xf32>
      %c0_35 = arith.constant 0 : index
      %c0_36 = arith.constant 0 : index
      %c0_37 = arith.constant 0 : index
      %64 = vector.load %arg7[%c0_35, %c0_36, %c0_37] : memref<1x1x32xf32, #tpu.memory_space<vmem>>, vector<1x1x32xf32>
      tpu.vector_store %arg7[%c0_35, %c0_36, %c0_37], %63 {strides = array<i32>} : memref<1x1x32xf32, #tpu.memory_space<vmem>>, vector<1x1x32xf32>,
    } else {
    }
    return
  }
  func.func @transform_0(%arg0: i32, %arg1: i32) -> (i32, i32, i32) {
    %c0_i32 = arith.constant 0 : i32
    %c0_i32_0 = arith.constant 0 : i32
    return %arg0, %arg1, %c0_i32 : i32, i32, i32
  }
  func.func @transform_1(%arg0: i32, %arg1: i32) -> (i32, i32, i32) {
    %c0_i32 = arith.constant 0 : i32
    %c0_i32_0 = arith.constant 0 : i32
    return %arg0, %arg1, %c0_i32 : i32, i32, i32
  }
  func.func @transform_2(%arg0: i32, %arg1: i32) -> (i32, i32) {
    %c0_i32 = arith.constant 0 : i32
    %c0_i32_0 = arith.constant 0 : i32
    %c0_i32_1 = arith.constant 0 : i32
    return %c0_i32, %c0_i32_0 : i32, i32
  }
  func.func @transform_3(%arg0: i32, %arg1: i32) -> (i32, i32) {
    %c0_i32 = arith.constant 0 : i32
    %c0_i32_0 = arith.constant 0 : i32
    %c0_i32_1 = arith.constant 0 : i32
    return %c0_i32, %c0_i32_0 : i32, i32
  }
  func.func @transform_4(%arg0: i32, %arg1: i32) -> (i32, i32) {
    %c0_i32 = arith.constant 0 : i32
    %c0_i32_0 = arith.constant 0 : i32
    %c0_i32_1 = arith.constant 0 : i32
    return %c0_i32, %c0_i32_0 : i32, i32
  }
  func.func @transform_5(%arg0: i32, %arg1: i32) -> (i32, i32, i32) {
    %c0_i32 = arith.constant 0 : i32
    %c0_i32_0 = arith.constant 0 : i32
    %c0_i32_1 = arith.constant 0 : i32
    return %arg0, %c0_i32, %c0_i32_0 : i32, i32, i32
  }
}

</mosaic_0001>

<llo_original>
// kernel: tpu_custom_call.1
$region0: #{tpu_custom_call.1}
  #allocation0 [shape = 'u32[]', space=smem, size = 0x4, offset = 0x4, fixed_abs, tag = 'smem constant byte address 0x4 - core index']
  #allocation1 [shape = 'u32[144,128]{1,0:T(1,128)}', space=vmem, size = 0x12000, scoped, tag = 'internal scratch']
  #allocation2 [shape = 'f32[1,1]{1,0:T(1,128)}', space=vmem, size = 0x200, scoped, tag = 'scratch operand']
  #allocation3 [shape = 'f32[1,1]{1,0:T(1,128)}', space=vmem, size = 0x200, scoped, tag = 'scratch operand']
  #allocation4 [shape = 'f32[1,256]{1,0:T(1,128)}', space=vmem, size = 0x400, scoped, tag = 'scratch operand']
  %s0 = inlined_call_operand.hbm [shape: f32[2,200,256], index: 0, kind: input, shape index: {}]
  %s1 = inlined_call_operand.vmem [shape: f32[2,200,1], index: 1, kind: input, shape index: {}]
  %s2 = inlined_call_operand.vmem [shape: f32[1,256], index: 2, kind: input, shape index: {}]
  %s3 = inlined_call_operand.vmem [shape: f32[256,32], index: 3, kind: input, shape index: {}]
  %s4 = inlined_call_operand.vmem [shape: f32[1,32], index: 4, kind: input, shape index: {}]
  %s5 = inlined_call_operand.hbm [shape: f32[2,1,32], index: 5, kind: output, shape index: {}]
  %s6 = sld [smem:[#allocation0]]
  $region65: #{tpu_custom_call.1} parent=0
    _
  %s8 = ssub.s32 1, %s6
  %s9 = scalar_select 0, %s8, %s6
  $region1: #{tpu_custom_call.1} parent=0
    #allocation5 [shape = 'u8[131072]{0}', space=vmem, size = 0x20000, scoped, tag = 'input window, operand 0']
    #allocation6 [shape = 's32[2]{0}', space=sflag, size = 0x8, scoped, tag = 'scoped memory for tpu_custom_call.1']
    #allocation7 [shape = 's32[2]{0}', space=sflag, size = 0x8, scoped, tag = 'scoped memory for tpu_custom_call.1']
    #allocation8 [shape = 'u8[1024]{0}', space=vmem, size = 0x400, scoped, tag = 'output window, operand 0']
    %10 = vsyncpa [#allocation6], 0
    %s11 = scalar_lea.sflag [#allocation6], 1
    %12 = vsyncpa %s11, 0
    %13 = vsyncpa [#allocation7], 0
    %s14 = scalar_lea.sflag [#allocation7], 1
    %15 = vsyncpa %s14, 0
    loop: start=0, step=1, limit=10
    $region2: #{tpu_custom_call.1} parent=1 // loop_pre_header
      _
    $region3: #{tpu_custom_call.1} parent=1 // loop_header
      %s17 = sphi 0, %s21
      %p18 = scmp.ge.s32.totalorder %s17, 10
      %s24 = sphi 0, %s36
      %s25 = sphi 0, %s32
      %s26 = sphi 0, %s24
      %s27 = sphi 0, %s25
      %s28 = sphi 0, %s26
      %s29 = sphi 0, %s27
      %s41 = sphi 0, %s43
      %s44 = sphi 0, %s41
      %s45 = sphi 0, %s44
      %s61 = sphi 0, %s45
      %s69 = sphi 0, %s71
      %s72 = sphi 0, %s69
      %s73 = sphi 0, %s72
      %s89 = sphi 0, %s73
      %s93 = sphi 0, %s93
      %s95 = sphi 0, %s93
      %s96 = sphi 0, %s95
      %s110 = sphi 0, %s96
      %s114 = sphi 0, %s114
      %s116 = sphi 0, %s114
      %s117 = sphi 0, %s116
      %s131 = sphi 0, %s117
      %s135 = sphi 0, %s135
      %s137 = sphi 0, %s135
      %s138 = sphi 0, %s137
      %s152 = sphi 0, %s138
      %s158 = sphi 0, %s160
      %s161 = sphi 0, %s158
      %s162 = sphi 0, %s161
      %s178 = sphi 0, %s162
    $region4: #{tpu_custom_call.1} parent=1 // loop_header_branch
      %20 = sbr.rel (%p18) target = $region8
    $region5: #{tpu_custom_call.1} parent=1 // loop_body
      %s22 = ssub.s32 %s17, 1
      %s23 = ssub.s32 %s17, 2
      %s30 = sadd.s32 1, %s25
      %p31 = scmp.ge.s32.totalorder %s30, 4
      %s32 = scalar_select %p31, 0, %s30
      %s33 = sadd.s32 1, %s24
      %s34 = scalar_select %p31, %s33, %s24
      %p35 = scmp.ge.s32.totalorder %s34, 2
      %s36 = scalar_select %p35, 0, %s34
      %s37 = ssub.s32 %s24, %s36
      %s38 = ssub.s32 %s25, %s32
      %s39 = sor.u32 %s37, %s38
      %p40 = scmp.eq.s32.totalorder %s39, 0
      %s42 = sadd.s32 %s41, 1
      %s43 = scalar_select %p40, %s41, %s42
      %p46 = pneg %p40
      %p47 = scmp.eq.s32.totalorder %s17, 7
      %p48 = por %p46, %p47
      %p49 = scmp.ne.s32.totalorder %s41, %s44
      %p50 = scmp.eq.s32.totalorder %s17, 0
      %p51 = por %p49, %p50
      %p52 = scmp.ne.s32.totalorder %s41, %s44
      %p53 = scmp.eq.s32.totalorder %s22, 7
      %p54 = por %p52, %p53
      %p55 = scmp.ne.s32.totalorder %s44, %s45
      %p56 = scmp.eq.s32.totalorder %s22, 0
      %p57 = por %p55, %p56
      %p58 = scmp.ne.s32.totalorder %s44, %s45
      %p59 = scmp.eq.s32.totalorder %s23, 7
      %p60 = por %p58, %p59
      %p62 = scmp.ne.s32.totalorder %s45, %s61
      %p63 = scmp.eq.s32.totalorder %s23, 0
      %p64 = por %p62, %p63
      %s65 = ssub.s32 %s24, %s36
      %s66 = ssub.s32 %s25, %s32
      %s67 = sor.u32 %s65, %s66
      %p68 = scmp.eq.s32.totalorder %s67, 0
      %s70 = sadd.s32 %s69, 1
      %s71 = scalar_select %p68, %s69, %s70
      %p74 = pneg %p68
      %p75 = scmp.eq.s32.totalorder %s17, 7
      %p76 = por %p74, %p75
      %p77 = scmp.ne.s32.totalorder %s69, %s72
      %p78 = scmp.eq.s32.totalorder %s17, 0
      %p79 = por %p77, %p78
      %p80 = scmp.ne.s32.totalorder %s69, %s72
      %p81 = scmp.eq.s32.totalorder %s22, 7
      %p82 = por %p80, %p81
      %p83 = scmp.ne.s32.totalorder %s72, %s73
      %p84 = scmp.eq.s32.totalorder %s22, 0
      %p85 = por %p83, %p84
      %p86 = scmp.ne.s32.totalorder %s72, %s73
      %p87 = scmp.eq.s32.totalorder %s23, 7
      %p88 = por %p86, %p87
      %p90 = scmp.ne.s32.totalorder %s73, %s89
      %p91 = scmp.eq.s32.totalorder %s23, 0
      %p92 = por %p90, %p91
      %s94 = sadd.s32 %s93, 1
      %p97 = scmp.eq.s32.totalorder %s17, 7
      %p98 = scmp.ne.s32.totalorder %s93, %s95
      %p99 = scmp.eq.s32.totalorder %s17, 0
      %p100 = por %p98, %p99
      %p101 = scmp.ne.s32.totalorder %s93, %s95
      %p102 = scmp.eq.s32.totalorder %s22, 7
      %p103 = por %p101, %p102
      %p104 = scmp.ne.s32.totalorder %s95, %s96
      %p105 = scmp.eq.s32.totalorder %s22, 0
      %p106 = por %p104, %p105
      %p107 = scmp.ne.s32.totalorder %s95, %s96
      %p108 = scmp.eq.s32.totalorder %s23, 7
      %p109 = por %p107, %p108
      %p111 = scmp.ne.s32.totalorder %s96, %s110
      %p112 = scmp.eq.s32.totalorder %s23, 0
      %p113 = por %p111, %p112
      %s115 = sadd.s32 %s114, 1
      %p118 = scmp.eq.s32.totalorder %s17, 7
      %p119 = scmp.ne.s32.totalorder %s114, %s116
      %p120 = scmp.eq.s32.totalorder %s17, 0
      %p121 = por %p119, %p120
      %p122 = scmp.ne.s32.totalorder %s114, %s116
      %p123 = scmp.eq.s32.totalorder %s22, 7
      %p124 = por %p122, %p123
      %p125 = scmp.ne.s32.totalorder %s116, %s117
      %p126 = scmp.eq.s32.totalorder %s22, 0
      %p127 = por %p125, %p126
      %p128 = scmp.ne.s32.totalorder %s116, %s117
      %p129 = scmp.eq.s32.totalorder %s23, 7
      %p130 = por %p128, %p129
      %p132 = scmp.ne.s32.totalorder %s117, %s131
      %p133 = scmp.eq.s32.totalorder %s23, 0
      %p134 = por %p132, %p133
      %s136 = sadd.s32 %s135, 1
      %p139 = scmp.eq.s32.totalorder %s17, 7
      %p140 = scmp.ne.s32.totalorder %s135, %s137
      %p141 = scmp.eq.s32.totalorder %s17, 0
      %p142 = por %p140, %p141
      %p143 = scmp.ne.s32.totalorder %s135, %s137
      %p144 = scmp.eq.s32.totalorder %s22, 7
      %p145 = por %p143, %p144
      %p146 = scmp.ne.s32.totalorder %s137, %s138
      %p147 = scmp.eq.s32.totalorder %s22, 0
      %p148 = por %p146, %p147
      %p149 = scmp.ne.s32.totalorder %s137, %s138
      %p150 = scmp.eq.s32.totalorder %s23, 7
      %p151 = por %p149, %p150
      %p153 = scmp.ne.s32.totalorder %s138, %s152
      %p154 = scmp.eq.s32.totalorder %s23, 0
      %p155 = por %p153, %p154
      %s156 = ssub.s32 %s24, %s36
      %p157 = scmp.eq.s32.totalorder %s156, 0
      %s159 = sadd.s32 %s158, 1
      %s160 = scalar_select %p157, %s158, %s159
      %p163 = pneg %p157
      %p164 = scmp.eq.s32.totalorder %s17, 7
      %p165 = por %p163, %p164
      %p166 = scmp.ne.s32.totalorder %s158, %s161
      %p167 = scmp.eq.s32.totalorder %s17, 0
      %p168 = por %p166, %p167
      %p169 = scmp.ne.s32.totalorder %s158, %s161
      %p170 = scmp.eq.s32.totalorder %s22, 7
      %p171 = por %p169, %p170
      %p172 = scmp.ne.s32.totalorder %s161, %s162
      %p173 = scmp.eq.s32.totalorder %s22, 0
      %p174 = por %p172, %p173
      %p175 = scmp.ne.s32.totalorder %s161, %s162
      %p176 = scmp.eq.s32.totalorder %s23, 7
      %p177 = por %p175, %p176
      %p179 = scmp.ne.s32.totalorder %s162, %s178
      %p180 = scmp.eq.s32.totalorder %s23, 0
      %p181 = por %p179, %p180
      %p182 = scmp.le.s32.totalorder 1, %s17
      %p183 = scmp.lt.s32.totalorder %s17, 9
      %p184 = pnand %p182, %p183
      %p185 = pneg %p184
      // Predicated region
      $region9: #{tpu_custom_call.1} parent=5 // pred_check
        _
      $region10: #{tpu_custom_call.1} parent=5 // pred_check_branch
        %187 = sbr.rel (%p184) target = $region12
      $region11: #{tpu_custom_call.1} parent=5 // pred_region
        %s188 = ssub.s32 %s17, 1
        // Predicated region
        $region13: #{tpu_custom_call.1} parent=11 // pred_check
          %p189 = pneg %p106
        $region14: #{tpu_custom_call.1} parent=11 // pred_check_branch
          %191 = sbr.rel (%p189) target = $region16
        $region15: #{tpu_custom_call.1} parent=11 // pred_region
          _
        $region16: #{tpu_custom_call.1} parent=11 // pred_fallthru
          _
        // Predicated region
        $region17: #{tpu_custom_call.1} parent=11 // pred_check
          %p192 = pneg %p127
        $region18: #{tpu_custom_call.1} parent=11 // pred_check_branch
          %194 = sbr.rel (%p192) target = $region20
        $region19: #{tpu_custom_call.1} parent=11 // pred_region
          _
        $region20: #{tpu_custom_call.1} parent=11 // pred_fallthru
          _
        // Predicated region
        $region21: #{tpu_custom_call.1} parent=11 // pred_check
          %p195 = pneg %p148
        $region22: #{tpu_custom_call.1} parent=11 // pred_check_branch
          %197 = sbr.rel (%p195) target = $region24
        $region23: #{tpu_custom_call.1} parent=11 // pred_region
          _
        $region24: #{tpu_custom_call.1} parent=11 // pred_fallthru
          _
      $region12: #{tpu_custom_call.1} parent=5 // pred_fallthru
        _
      %p198 = scmp.lt.s32.totalorder %s17, 8
      // Predicated region
      $region25: #{tpu_custom_call.1} parent=5 // pred_check
        %p199 = pneg %p198
      $region26: #{tpu_custom_call.1} parent=5 // pred_check_branch
        %201 = sbr.rel (%p199) target = $region28
      $region27: #{tpu_custom_call.1} parent=5 // pred_region
        // Predicated region
        $region29: #{tpu_custom_call.1} parent=27 // pred_check
          %p202 = pneg %p51
        $region30: #{tpu_custom_call.1} parent=27 // pred_check_branch
          %204 = sbr.rel (%p202) target = $region32
        $region31: #{tpu_custom_call.1} parent=27 // pred_region
          %s205 = sand.u32 %s41, 1
          %s206 = scalar_lea.sflag [#allocation6], %s205
          %s207 = sand.u32 %s41, 1
          %s208 = smul.addr %s207, 128
          %s209 = scalar_lea.vmem [#allocation5], %s208
          %s210 = smul.u32 8, %s25
          %s211 = ssub.s32 25, %s210
          %p212 = scmp.lt.s32.totalorder %s211, 8
          %s213 = scalar_select %p212, %s211, 8
          %s214 = smul.u32 128, %s213
          %s215 = smul.u32 %s214, 2
          %s217 = ssub.s32 2048, %s215
          %218 = vsyncadd %s206, %s217
          %p219 = scmp.ne.s32.totalorder 0, %s215
          %s220 = smul.addr %s210, 2
          %s221 = smul.addr %s24, 50
          %s222 = sadd.s32 %s220, %s221
          %s223 = smul.addr %s222, 128
          %s224 = scalar_lea.hbm %s0, %s223
          %s225 = smul.u32 16, %s213
          %s226 = sshll.u32 %s209, 4
          %s227 = int_to_ptr.vmem [resolvable:$true] %s226
          %s228 = sshll.u32 %s225, 4
          %232 = dma.hbm_to_vmem [thread:$0]  (%p219), %s224, %s228, %s227, %s206, 256, 256, 16
        $region32: #{tpu_custom_call.1} parent=27 // pred_fallthru
          _
        // Predicated region
        $region33: #{tpu_custom_call.1} parent=27 // pred_check
          %p233 = pneg %p79
        $region34: #{tpu_custom_call.1} parent=27 // pred_check_branch
          %235 = sbr.rel (%p233) target = $region36
        $region35: #{tpu_custom_call.1} parent=27 // pred_region
          %s236 = smul.u32 8, %s25
          %s237 = ssub.s32 25, %s236
          %p238 = scmp.lt.s32.totalorder %s237, 8
          %s239 = scalar_select %p238, %s237, 8
          %s240 = smul.u32 128, %s239
          %p241 = scmp.lt.s32.totalorder %s24, 1
          %s242 = scalar_select %p241, %s24, 1
          %p243 = scmp.lt.s32.totalorder %s236, 24
          %s244 = scalar_select %p243, %s236, 24
          %s245 = smul.addr %s242, 25
          %s246 = sadd.s32 %s244, %s245
          %s247 = smul.addr %s246, 8
          %s248 = scalar_lea.vmem %s1, %s247
          %s249 = smul.u32 8, %s25
          %s250 = ssub.s32 25, %s249
          %p251 = scmp.lt.s32.totalorder %s250, 8
          %s252 = scalar_select %p251, %s250, 8
          %s253 = smul.u32 128, %s252
        $region36: #{tpu_custom_call.1} parent=27 // pred_fallthru
          _
      $region28: #{tpu_custom_call.1} parent=5 // pred_fallthru
        _
      %p254 = scmp.le.s32.totalorder 1, %s17
      %p255 = scmp.lt.s32.totalorder %s17, 9
      %p256 = pnand %p254, %p255
      %p257 = pneg %p256
      // Predicated region
      $region37: #{tpu_custom_call.1} parent=5 // pred_check
        _
      $region38: #{tpu_custom_call.1} parent=5 // pred_check_branch
        %259 = sbr.rel (%p256) target = $region40
      $region39: #{tpu_custom_call.1} parent=5 // pred_region
        %s260 = ssub.s32 %s17, 1
        %s261 = sand.u32 %s44, 1
        %s262 = scalar_lea.sflag [#allocation6], %s261
        %s263 = sand.u32 %s44, 1
        %s264 = smul.addr %s263, 128
        %s265 = scalar_lea.vmem [#allocation5], %s264
        // Predicated region
        $region41: #{tpu_custom_call.1} parent=39 // pred_check
          %p266 = pneg %p57
        $region42: #{tpu_custom_call.1} parent=39 // pred_check_branch
          %268 = sbr.rel (%p266) target = $region44
        $region43: #{tpu_custom_call.1} parent=39 // pred_region
          %269 = dma.done %s262, 2048
        $region44: #{tpu_custom_call.1} parent=39 // pred_fallthru
          _
        %s270 = sand.u32 %s44, 1
        %s271 = scalar_lea.sflag [#allocation6], %s270
        %s272 = sand.u32 %s44, 1
        %s273 = smul.addr %s272, 128
        %s274 = scalar_lea.vmem [#allocation5], %s273
        %p275 = pneg %p57
        %p276 = pneg %p54
        %s277 = smul.u32 8, %s27
        %s278 = ssub.s32 25, %s277
        %p279 = scmp.lt.s32.totalorder %s278, 8
        %s280 = scalar_select %p279, %s278, 8
        %s281 = smul.u32 128, %s280
        %p282 = scmp.lt.s32.totalorder %s26, 1
        %s283 = scalar_select %p282, %s26, 1
        %p284 = scmp.lt.s32.totalorder %s277, 24
        %s285 = scalar_select %p284, %s277, 24
        %s286 = smul.addr %s283, 25
        %s287 = sadd.s32 %s285, %s286
        %s288 = smul.addr %s287, 8
        %s289 = scalar_lea.vmem %s1, %s288
        %p290 = pneg %p85
        %p291 = pneg %p82
        %p292 = pneg %p106
        %p293 = pneg %p103
        %p294 = pneg %p127
        %p295 = pneg %p124
        %p296 = pneg %p148
        %p297 = pneg %p145
        %p298 = pneg %p174
        %p299 = pneg %p171
        %s300 = sand.u32 %s161, 1
        %s301 = scalar_lea.sflag [#allocation7], %s300
        %s302 = sand.u32 %s161, 1
        %s303 = scalar_lea.vmem [#allocation8], %s302
        %s304 = smul.u32 8, %s27
        %s305 = ssub.s32 25, %s304
        %p306 = scmp.lt.s32.totalorder %s305, 8
        %s307 = scalar_select %p306, %s305, 8
        %s308 = smul.u32 128, %s307
        %s309 = smul.u32 %s308, 2
        %s310 = smul.u32 8, %s27
        %s311 = ssub.s32 25, %s310
        %p312 = scmp.lt.s32.totalorder %s311, 8
        %s313 = scalar_select %p312, %s311, 8
        %s314 = smul.u32 128, %s313
        %p315 = scmp.lt.s32.totalorder %s26, 1
        %s316 = scalar_select %p315, %s26, 1
        %p317 = scmp.lt.s32.totalorder %s310, 24
        %s318 = scalar_select %p317, %s310, 24
        %s319 = smul.addr %s316, 25
        %s320 = sadd.s32 %s318, %s319
        %s321 = smul.addr %s320, 8
        %s322 = scalar_lea.vmem %s1, %s321
        %s323 = smul.u32 8, %s27
        %s324 = ssub.s32 25, %s323
        %p325 = scmp.lt.s32.totalorder %s324, 8
        %s326 = scalar_select %p325, %s324, 8
        %s327 = smul.u32 128, %s326
        %p328 = scmp.eq.s32.totalorder %s27, 0
        // Predicated region
        $region45: #{tpu_custom_call.1} parent=39 // pred_check
          %p329 = pneg %p328
        $region46: #{tpu_custom_call.1} parent=39 // pred_check_branch
          %331 = sbr.rel (%p329) target = $region48
        $region47: #{tpu_custom_call.1} parent=39 // pred_region
          %vm332 = vcmask 0
          %333 = vst.msk [vmem:[#allocation2] sm:$0x1] %vm332, -inf
          %334 = vst.msk [vmem:[#allocation3] sm:$0x1] %vm332, 0.0
          %v335 = vlaneseq
          %vm336 = vcmp.ge.s32.totalorder %v335, 0
          %vm337 = vcmp.lt.s32.totalorder %v335, 256
          %vm338 = vmand %vm336, %vm337
          %339 = vst.msk [vmem:[#allocation4] sm:$0x3] %vm338, 0.0
        $region48: #{tpu_custom_call.1} parent=39 // pred_fallthru
          _
        %s340 = smul.u32 %s27, 64
        %v341 = vlaneseq
        %v342 = vshrl.u32 %v341, 7
        %v343 = vadd.s32 %v342, 8
        %v344 = vadd.s32 %v342, 16
        %v345 = vadd.s32 %v342, 24
        %v346 = vadd.s32 %v342, 32
        %v347 = vadd.s32 %v342, 40
        %v348 = vadd.s32 %v342, 48
        %v349 = vadd.s32 %v342, 56
        %v350 = vstv %s340
        %v351 = vadd.s32 %v350, %v342
        %v352 = vadd.s32 %v350, %v343
        %v353 = vadd.s32 %v350, %v344
        %v354 = vadd.s32 %v350, %v345
        %v355 = vadd.s32 %v350, %v346
        %v356 = vadd.s32 %v350, %v347
        %v357 = vadd.s32 %v350, %v348
        %v358 = vadd.s32 %v350, %v349
        %vm359 = vcmp.lt.s32.totalorder %v351, 200
        %vm360 = vcmp.lt.s32.totalorder %v352, 200
        %vm361 = vcmp.lt.s32.totalorder %v353, 200
        %vm362 = vcmp.lt.s32.totalorder %v354, 200
        %vm363 = vcmp.lt.s32.totalorder %v355, 200
        %vm364 = vcmp.lt.s32.totalorder %v356, 200
        %vm365 = vcmp.lt.s32.totalorder %v357, 200
        %vm366 = vcmp.lt.s32.totalorder %v358, 200
        %v367 = vld [vmem:[%s265] sm:$0xff]
        %v368 = vld [vmem:[%s265 + $0x8] sm:$0xff]
        %v369 = vld [vmem:[%s265 + $0x10] sm:$0xff]
        %v370 = vld [vmem:[%s265 + $0x18] sm:$0xff]
        %v371 = vld [vmem:[%s265 + $0x20] sm:$0xff]
        %v372 = vld [vmem:[%s265 + $0x28] sm:$0xff]
        %v373 = vld [vmem:[%s265 + $0x30] sm:$0xff]
        %v374 = vld [vmem:[%s265 + $0x38] sm:$0xff]
        %v375 = vld [vmem:[%s265 + $0x40] sm:$0xff]
        %v376 = vld [vmem:[%s265 + $0x48] sm:$0xff]
        %v377 = vld [vmem:[%s265 + $0x50] sm:$0xff]
        %v378 = vld [vmem:[%s265 + $0x58] sm:$0xff]
        %v379 = vld [vmem:[%s265 + $0x60] sm:$0xff]
        %v380 = vld [vmem:[%s265 + $0x68] sm:$0xff]
        %v381 = vld [vmem:[%s265 + $0x70] sm:$0xff]
        %v382 = vld [vmem:[%s265 + $0x78] sm:$0xff]
        %v383 = vtanh.pop %v367
        %v384 = vtanh.pop %v368
        %v385 = vtanh.pop %v369
        %v386 = vtanh.pop %v370
        %v387 = vtanh.pop %v371
        %v388 = vtanh.pop %v372
        %v389 = vtanh.pop %v373
        %v390 = vtanh.pop %v374
        %v391 = vtanh.pop %v375
        %v392 = vtanh.pop %v376
        %v393 = vtanh.pop %v377
        %v394 = vtanh.pop %v378
        %v395 = vtanh.pop %v379
        %v396 = vtanh.pop %v380
        %v397 = vtanh.pop %v381
        %v398 = vtanh.pop %v382
        %v399 = vsel %vm359, 1, 0
        %v400 = vsel %vm360, 1, 0
        %v401 = vsel %vm361, 1, 0
        %v402 = vsel %vm362, 1, 0
        %v403 = vsel %vm363, 1, 0
        %v404 = vsel %vm364, 1, 0
        %v405 = vsel %vm365, 1, 0
        %v406 = vsel %vm366, 1, 0
        %vm407 = vcmp.eq.s32.totalorder %v399, 1
        %vm408 = vcmp.eq.s32.totalorder %v400, 1
        %vm409 = vcmp.eq.s32.totalorder %v401, 1
        %vm410 = vcmp.eq.s32.totalorder %v402, 1
        %vm411 = vcmp.eq.s32.totalorder %v403, 1
        %vm412 = vcmp.eq.s32.totalorder %v404, 1
        %vm413 = vcmp.eq.s32.totalorder %v405, 1
        %vm414 = vcmp.eq.s32.totalorder %v406, 1
        %v415 = vsel %vm407, %v383, 0.0
        %v416 = vsel %vm407, %v384, 0.0
        %v417 = vsel %vm408, %v385, 0.0
        %v418 = vsel %vm408, %v386, 0.0
        %v419 = vsel %vm409, %v387, 0.0
        %v420 = vsel %vm409, %v388, 0.0
        %v421 = vsel %vm410, %v389, 0.0
        %v422 = vsel %vm410, %v390, 0.0
        %v423 = vsel %vm411, %v391, 0.0
        %v424 = vsel %vm411, %v392, 0.0
        %v425 = vsel %vm412, %v393, 0.0
        %v426 = vsel %vm412, %v394, 0.0
        %v427 = vsel %vm413, %v395, 0.0
        %v428 = vsel %vm413, %v396, 0.0
        %v429 = vsel %vm414, %v397, 0.0
        %v430 = vsel %vm414, %v398, 0.0
        %v431 = vld [vmem:[%s2] sm:$0x3]
        %v433 = vlaneseq
        %v434 = vshrl.u32 %v433, 7
        %v435 = vsub.s32 0, %v434
        %v436 = vrot.slane %v431, %v435
        %v437 = vlaneseq
        %v438 = vshrl.u32 %v437, 7
        %v439 = vsub.s32 1, %v438
        %v440 = vrot.slane %v431, %v439
        %v443 = vmul.f32 %v415, %v436
        %v444 = vmul.f32 %v416, %v440
        %v445 = vmul.f32 %v417, %v436
        %v446 = vmul.f32 %v418, %v440
        %v447 = vmul.f32 %v419, %v436
        %v448 = vmul.f32 %v420, %v440
        %v449 = vmul.f32 %v421, %v436
        %v450 = vmul.f32 %v422, %v440
        %v451 = vmul.f32 %v423, %v436
        %v452 = vmul.f32 %v424, %v440
        %v453 = vmul.f32 %v425, %v436
        %v454 = vmul.f32 %v426, %v440
        %v455 = vmul.f32 %v427, %v436
        %v456 = vmul.f32 %v428, %v440
        %v457 = vmul.f32 %v429, %v436
        %v458 = vmul.f32 %v430, %v440
        %v459 = vadd.f32 %v443, %v444
        %460 = vadd.xlane.f32.xlu0 %v459
        %v461 = vpop.xlane.xlu0 %460
        %v462 = vadd.f32 %v445, %v446
        %463 = vadd.xlane.f32.xlu0 %v462
        %v464 = vpop.xlane.xlu0 %463
        %v465 = vadd.f32 %v447, %v448
        %466 = vadd.xlane.f32.xlu0 %v465
        %v467 = vpop.xlane.xlu0 %466
        %v468 = vadd.f32 %v449, %v450
        %469 = vadd.xlane.f32.xlu0 %v468
        %v470 = vpop.xlane.xlu0 %469
        %v471 = vadd.f32 %v451, %v452
        %472 = vadd.xlane.f32.xlu0 %v471
        %v473 = vpop.xlane.xlu0 %472
        %v474 = vadd.f32 %v453, %v454
        %475 = vadd.xlane.f32.xlu0 %v474
        %v476 = vpop.xlane.xlu0 %475
        %v477 = vadd.f32 %v455, %v456
        %478 = vadd.xlane.f32.xlu0 %v477
        %v479 = vpop.xlane.xlu0 %478
        %v480 = vadd.f32 %v457, %v458
        %481 = vadd.xlane.f32.xlu0 %v480
        %v482 = vpop.xlane.xlu0 %481
        %v483 = vld [vmem:[%s322] sm:$0xff]
        %v484 = vld [vmem:[%s322 + $0x8] sm:$0xff]
        %v485 = vld [vmem:[%s322 + $0x10] sm:$0xff]
        %v486 = vld [vmem:[%s322 + $0x18] sm:$0xff]
        %v487 = vld [vmem:[%s322 + $0x20] sm:$0xff]
        %v488 = vld [vmem:[%s322 + $0x28] sm:$0xff]
        %v489 = vld [vmem:[%s322 + $0x30] sm:$0xff]
        %v490 = vld [vmem:[%s322 + $0x38] sm:$0xff]
        %v491 = vadd.f32 %v461, %v483
        %v492 = vadd.f32 %v464, %v484
        %v493 = vadd.f32 %v467, %v485
        %v494 = vadd.f32 %v470, %v486
        %v495 = vadd.f32 %v473, %v487
        %v496 = vadd.f32 %v476, %v488
        %v497 = vadd.f32 %v479, %v489
        %v498 = vadd.f32 %v482, %v490
        %v499 = vsel %vm359, %v491, -1e+30
        %v500 = vsel %vm360, %v492, -1e+30
        %v501 = vsel %vm361, %v493, -1e+30
        %v502 = vsel %vm362, %v494, -1e+30
        %v503 = vsel %vm363, %v495, -1e+30
        %v504 = vsel %vm364, %v496, -1e+30
        %v505 = vsel %vm365, %v497, -1e+30
        %v506 = vsel %vm366, %v498, -1e+30
        %v507 = vld [vmem:[#allocation2] sm:$0x1]
        %vm508 = vcmask 7168
        %v509 = vsel %vm508, %v499, -inf
        %v510 = vsel %vm508, %v500, -inf
        %v511 = vsel %vm508, %v501, -inf
        %v512 = vsel %vm508, %v502, -inf
        %v513 = vsel %vm508, %v503, -inf
        %v514 = vmax.f32 %v509, %v513
        %v515 = vsel %vm508, %v504, -inf
        %v516 = vmax.f32 %v510, %v515
        %v517 = vsel %vm508, %v505, -inf
        %v518 = vmax.f32 %v511, %v517
        %v519 = vsel %vm508, %v506, -inf
        %v520 = vmax.f32 %v512, %v519
        %v521 = vmax.f32 %v514, %v516
        %v522 = vmax.f32 %v518, %v520
        %v523 = vmax.f32 %v521, %v522
        %v524 = vrot.slane %v523, 4
        %v525 = vmax.f32 %v523, %v524
        %v526 = vrot.slane %v525, 2
        %v527 = vmax.f32 %v525, %v526
        %v528 = vrot.slane %v527, 1
        %v529 = vmax.f32 %v527, %v528
        %v530 = vmax.f32 %v507, %v529
        %v531 = vsub.f32 %v507, %v530
        %v532 = vmul.f32 %v531, 1.442695
        %v533 = vpow.pop %v532
        %v535 = vlaneseq
        %v536 = vshrl.u32 %v535, 7
        %v537 = vsub.s32 0, %v536
        %v538 = vrot.slane %v530, %v537
        %v540 = vsub.f32 %v499, %v538
        %v541 = vsub.f32 %v500, %v538
        %v542 = vsub.f32 %v501, %v538
        %v543 = vsub.f32 %v502, %v538
        %v544 = vsub.f32 %v503, %v538
        %v545 = vsub.f32 %v504, %v538
        %v546 = vsub.f32 %v505, %v538
        %v547 = vsub.f32 %v506, %v538
        %v548 = vmul.f32 %v540, 1.442695
        %v549 = vpow.pop %v548
        %v550 = vmul.f32 %v541, 1.442695
        %v551 = vpow.pop %v550
        %v552 = vmul.f32 %v542, 1.442695
        %v553 = vpow.pop %v552
        %v554 = vmul.f32 %v543, 1.442695
        %v555 = vpow.pop %v554
        %v556 = vmul.f32 %v544, 1.442695
        %v557 = vpow.pop %v556
        %v558 = vmul.f32 %v545, 1.442695
        %v559 = vpow.pop %v558
        %v560 = vmul.f32 %v546, 1.442695
        %v561 = vpow.pop %v560
        %v562 = vmul.f32 %v547, 1.442695
        %v563 = vpow.pop %v562
        %v564 = vld [vmem:[#allocation3] sm:$0x1]
        %v565 = vmul.f32 %v533, %v564
        %v566 = vsel %vm508, %v549, 0.0
        %v567 = vsel %vm508, %v551, 0.0
        %v568 = vadd.f32 %v566, %v567
        %v569 = vsel %vm508, %v553, 0.0
        %v570 = vadd.f32 %v568, %v569
        %v571 = vsel %vm508, %v555, 0.0
        %v572 = vadd.f32 %v570, %v571
        %v573 = vsel %vm508, %v557, 0.0
        %v574 = vadd.f32 %v572, %v573
        %v575 = vsel %vm508, %v559, 0.0
        %v576 = vadd.f32 %v574, %v575
        %v577 = vsel %vm508, %v561, 0.0
        %v578 = vadd.f32 %v576, %v577
        %v579 = vsel %vm508, %v563, 0.0
        %v580 = vadd.f32 %v578, %v579
        %v581 = vrot.slane %v580, 4
        %v582 = vadd.f32 %v580, %v581
        %v583 = vrot.slane %v582, 2
        %v584 = vadd.f32 %v582, %v583
        %v585 = vrot.slane %v584, 1
        %v586 = vadd.f32 %v584, %v585
        %v587 = vadd.f32 %v565, %v586
        %vm588 = vcmask 0
        %589 = vst.msk [vmem:[#allocation3] sm:$0x1] %vm588, %v587
        %591 = vset.pattern.permute.xlu0 0
        %592 = vperm.xlu0 %591, %v549
        %v593 = vpop.permute.xlu0 %592
        %596 = vset.pattern.permute.xlu0 0
        %597 = vperm.xlu0 %596, %v551
        %v598 = vpop.permute.xlu0 %597
        %601 = vset.pattern.permute.xlu0 0
        %602 = vperm.xlu0 %601, %v553
        %v603 = vpop.permute.xlu0 %602
        %606 = vset.pattern.permute.xlu0 0
        %607 = vperm.xlu0 %606, %v555
        %v608 = vpop.permute.xlu0 %607
        %611 = vset.pattern.permute.xlu0 0
        %612 = vperm.xlu0 %611, %v557
        %v613 = vpop.permute.xlu0 %612
        %616 = vset.pattern.permute.xlu0 0
        %617 = vperm.xlu0 %616, %v559
        %v618 = vpop.permute.xlu0 %617
        %621 = vset.pattern.permute.xlu0 0
        %622 = vperm.xlu0 %621, %v561
        %v623 = vpop.permute.xlu0 %622
        %626 = vset.pattern.permute.xlu0 0
        %627 = vperm.xlu0 %626, %v563
        %v628 = vpop.permute.xlu0 %627
        %v630 = vmul.f32 %v415, %v593
        %v631 = vmul.f32 %v416, %v593
        %v632 = vmul.f32 %v417, %v598
        %v633 = vmul.f32 %v418, %v598
        %v634 = vmul.f32 %v419, %v603
        %v635 = vmul.f32 %v420, %v603
        %v636 = vmul.f32 %v421, %v608
        %v637 = vmul.f32 %v422, %v608
        %v638 = vmul.f32 %v423, %v613
        %v639 = vmul.f32 %v424, %v613
        %v640 = vmul.f32 %v425, %v618
        %v641 = vmul.f32 %v426, %v618
        %v642 = vmul.f32 %v427, %v623
        %v643 = vmul.f32 %v428, %v623
        %v644 = vmul.f32 %v429, %v628
        %v645 = vmul.f32 %v430, %v628
        %v646 = vadd.f32 %v630, %v632
        %v647 = vadd.f32 %v646, %v634
        %v648 = vadd.f32 %v647, %v636
        %v649 = vadd.f32 %v648, %v638
        %v650 = vadd.f32 %v649, %v640
        %v651 = vadd.f32 %v650, %v642
        %v652 = vadd.f32 %v651, %v644
        %v653 = vrot.slane %v652, 4
        %v654 = vadd.f32 %v652, %v653
        %v655 = vrot.slane %v654, 2
        %v656 = vadd.f32 %v654, %v655
        %v657 = vrot.slane %v656, 1
        %v658 = vadd.f32 %v656, %v657
        %v659 = vadd.f32 %v631, %v633
        %v660 = vadd.f32 %v659, %v635
        %v661 = vadd.f32 %v660, %v637
        %v662 = vadd.f32 %v661, %v639
        %v663 = vadd.f32 %v662, %v641
        %v664 = vadd.f32 %v663, %v643
        %v665 = vadd.f32 %v664, %v645
        %v666 = vrot.slane %v665, 4
        %v667 = vadd.f32 %v665, %v666
        %v668 = vrot.slane %v667, 2
        %v669 = vadd.f32 %v667, %v668
        %v670 = vrot.slane %v669, 1
        %v671 = vadd.f32 %v669, %v670
        %v672 = vld [vmem:[#allocation4] sm:$0x3]
        %674 = vset.pattern.permute.xlu0 0
        %675 = vperm.xlu0 %674, %v533
        %v676 = vpop.permute.xlu0 %675
        %v678 = vlaneseq
        %v679 = vshrl.u32 %v678, 7
        %v680 = vsub.s32 0, %v679
        %v681 = vrot.slane %v676, %v680
        %v682 = vmul.f32 %v681, %v672
        %v685 = vcombine.low %v658, %v671
        %v687 = vunpack.c.l.s4 1966171168
        %v688 = vunpack.c.0.s8 %v687
        %v689 = vlaneseq
        %v690 = vshrl.u32 %v689, 7
        %v691 = vsub.s32 %v688, %v690
        %v692 = vrot.slane %v685, %v691
        %v694 = vunpack.c.l.s4 1966171168
        %v695 = vunpack.c.0.s8 %v694
        %v696 = vlaneseq
        %v697 = vshrl.u32 %v696, 7
        %v698 = vsub.s32 %v695, %v697
        %v699 = vrot.slane %v692, %v698
        %v701 = vadd.f32 %v682, %v699
        %v702 = vlaneseq
        %vm703 = vcmp.ge.s32.totalorder %v702, 0
        %vm704 = vcmp.lt.s32.totalorder %v702, 256
        %vm705 = vmand %vm703, %vm704
        %706 = vst.msk [vmem:[#allocation4] sm:$0x3] %vm705, %v701
        %707 = vst.msk [vmem:[#allocation2] sm:$0x1] %vm588, %v530
        %p708 = scmp.eq.s32.totalorder %s27, 3
        // Predicated region
        $region49: #{tpu_custom_call.1} parent=39 // pred_check
          %p709 = pneg %p708
        $region50: #{tpu_custom_call.1} parent=39 // pred_check_branch
          %711 = sbr.rel (%p709) target = $region52
        $region51: #{tpu_custom_call.1} parent=39 // pred_region
          %v712 = vld [vmem:[#allocation3] sm:$0x1]
          %v713 = vrcp.pop %v712
          %v714 = vld [vmem:[#allocation4] sm:$0x3]
          %716 = vset.pattern.permute.xlu0 0
          %717 = vperm.xlu0 %716, %v713
          %v718 = vpop.permute.xlu0 %717
          %v720 = vlaneseq
          %v721 = vshrl.u32 %v720, 7
          %v722 = vsub.s32 0, %v721
          %v723 = vrot.slane %v718, %v722
          %v724 = vmul.f32 %v714, %v723
          %v725 = vld [vmem:[%s3] sm:$0xff]
          %v726 = vld [vmem:[%s3 + $0x8] sm:$0xff]
          %v727 = vld [vmem:[%s3 + $0x10] sm:$0xff]
          %v728 = vld [vmem:[%s3 + $0x18] sm:$0xff]
          %v729 = vld [vmem:[%s3 + $0x20] sm:$0xff]
          %v730 = vld [vmem:[%s3 + $0x28] sm:$0xff]
          %v731 = vld [vmem:[%s3 + $0x30] sm:$0xff]
          %v732 = vld [vmem:[%s3 + $0x38] sm:$0xff]
          %v733 = vld [vmem:[%s3 + $0x40] sm:$0xff]
          %v734 = vld [vmem:[%s3 + $0x48] sm:$0xff]
          %v735 = vld [vmem:[%s3 + $0x50] sm:$0xff]
          %v736 = vld [vmem:[%s3 + $0x58] sm:$0xff]
          %v737 = vld [vmem:[%s3 + $0x60] sm:$0xff]
          %v738 = vld [vmem:[%s3 + $0x68] sm:$0xff]
          %v739 = vld [vmem:[%s3 + $0x70] sm:$0xff]
          %v740 = vld [vmem:[%s3 + $0x78] sm:$0xff]
          %v741 = vld [vmem:[%s3 + $0x80] sm:$0xff]
          %v742 = vld [vmem:[%s3 + $0x88] sm:$0xff]
          %v743 = vld [vmem:[%s3 + $0x90] sm:$0xff]
          %v744 = vld [vmem:[%s3 + $0x98] sm:$0xff]
          %v745 = vld [vmem:[%s3 + $0xa0] sm:$0xff]
          %v746 = vld [vmem:[%s3 + $0xa8] sm:$0xff]
          %v747 = vld [vmem:[%s3 + $0xb0] sm:$0xff]
          %v748 = vld [vmem:[%s3 + $0xb8] sm:$0xff]
          %v749 = vld [vmem:[%s3 + $0xc0] sm:$0xff]
          %v750 = vld [vmem:[%s3 + $0xc8] sm:$0xff]
          %v751 = vld [vmem:[%s3 + $0xd0] sm:$0xff]
          %v752 = vld [vmem:[%s3 + $0xd8] sm:$0xff]
          %v753 = vld [vmem:[%s3 + $0xe0] sm:$0xff]
          %v754 = vld [vmem:[%s3 + $0xe8] sm:$0xff]
          %v755 = vld [vmem:[%s3 + $0xf0] sm:$0xff]
          %v756 = vld [vmem:[%s3 + $0xf8] sm:$0xff]
          %v757 = vld [vmem:[%s4] sm:$0x1]
          %v759 = vlaneseq
          %v760 = vshrl.u32 %v759, 7
          %v761 = vsub.s32 0, %v760
          %v762 = vrot.slane %v724, %v761
          %v763 = vlaneseq
          %v764 = vshrl.u32 %v763, 7
          %v765 = vsub.s32 1, %v764
          %v766 = vrot.slane %v724, %v765
          %769 = vmatprep.subr.mxu0 0.0
          %770 = vmatpush1.msra.mxu0 %v725
          %771 = vmatprep.subr.mxu0 0.0
          %772 = vmatpush1.msra.mxu0 %v726
          %773 = vmatprep.subr.mxu0 0.0
          %774 = vmatpush1.msra.mxu0 %v727
          %775 = vmatprep.subr.mxu0 0.0
          %776 = vmatpush1.msra.mxu0 %v728
          %777 = vmatprep.subr.mxu0 0.0
          %778 = vmatpush1.msra.mxu0 %v729
          %779 = vmatprep.subr.mxu0 0.0
          %780 = vmatpush1.msra.mxu0 %v730
          %781 = vmatprep.subr.mxu0 0.0
          %782 = vmatpush1.msra.mxu0 %v731
          %783 = vmatprep.subr.mxu0 0.0
          %784 = vmatpush1.msra.mxu0 %v732
          %785 = vmatprep.subr.mxu0 0.0
          %786 = vmatpush1.msra.mxu0 %v733
          %787 = vmatprep.subr.mxu0 0.0
          %788 = vmatpush1.msra.mxu0 %v734
          %789 = vmatprep.subr.mxu0 0.0
          %790 = vmatpush1.msra.mxu0 %v735
          %791 = vmatprep.subr.mxu0 0.0
          %792 = vmatpush1.msra.mxu0 %v736
          %793 = vmatprep.subr.mxu0 0.0
          %794 = vmatpush1.msra.mxu0 %v737
          %795 = vmatprep.subr.mxu0 0.0
          %796 = vmatpush1.msra.mxu0 %v738
          %797 = vmatprep.subr.mxu0 0.0
          %798 = vmatpush1.msra.mxu0 %v739
          %799 = vmatprep.subr.mxu0 0.0
          %800 = vmatpush1.msra.mxu0 %v740
          %801 = vmatprep.subr.mxu0 0.0
          %802 = vmatpush1.msra.mxu0 %v741
          %803 = vmatprep.subr.mxu0 0.0
          %804 = vmatpush1.msra.mxu0 %v742
          %805 = vmatprep.subr.mxu0 0.0
          %806 = vmatpush1.msra.mxu0 %v743
          %807 = vmatprep.subr.mxu0 0.0
          %808 = vmatpush1.msra.mxu0 %v744
          %809 = vmatprep.subr.mxu0 0.0
          %810 = vmatpush1.msra.mxu0 %v745
          %811 = vmatprep.subr.mxu0 0.0
          %812 = vmatpush1.msra.mxu0 %v746
          %813 = vmatprep.subr.mxu0 0.0
          %814 = vmatpush1.msra.mxu0 %v747
          %815 = vmatprep.subr.mxu0 0.0
          %816 = vmatpush1.msra.mxu0 %v748
          %817 = vmatprep.subr.mxu0 0.0
          %818 = vmatpush1.msra.mxu0 %v749
          %819 = vmatprep.subr.mxu0 0.0
          %820 = vmatpush1.msra.mxu0 %v750
          %821 = vmatprep.subr.mxu0 0.0
          %822 = vmatpush1.msra.mxu0 %v751
          %823 = vmatprep.subr.mxu0 0.0
          %824 = vmatpush1.msra.mxu0 %v752
          %825 = vmatprep.subr.mxu0 0.0
          %826 = vmatpush1.msra.mxu0 %v753
          %827 = vmatprep.subr.mxu0 0.0
          %828 = vmatpush1.msra.mxu0 %v754
          %829 = vmatprep.subr.mxu0 0.0
          %830 = vmatpush1.msra.mxu0 %v755
          %831 = vmatprep.subr.mxu0 0.0
          %832 = vmatpush1.msra.mxu0 %v756
          %833 = vmatprep.mubr.f32.mxu0 %v766
          %834 = vmatmul.mubr.f32.gmra.mrb[0].mxu0 %v762
          %v835 = vpop.f32.mrb[0].mxu0
          %v836 = vadd.f32 %v757, %v835
          %v837 = vpop.f32.mrb[0].mxu0
          %838 = vdwg.mxu0
          %vm839 = vcmask 253952
          %840 = vst.msk [vmem:[%s303] sm:$0x1] %vm839, %v836
        $region52: #{tpu_custom_call.1} parent=39 // pred_fallthru
          _
        %s841 = sand.u32 %s161, 1
        %s842 = scalar_lea.sflag [#allocation7], %s841
        %s843 = sand.u32 %s161, 1
        %s844 = scalar_lea.vmem [#allocation8], %s843
        // Predicated region
        $region53: #{tpu_custom_call.1} parent=39 // pred_check
          %p845 = pneg %p171
        $region54: #{tpu_custom_call.1} parent=39 // pred_check_branch
          %847 = sbr.rel (%p845) target = $region56
        $region55: #{tpu_custom_call.1} parent=39 // pred_region
          %s849 = ssub.s32 16, 16
          %850 = vsyncadd %s842, %s849
          %s851 = smul.addr %s26, 16
          %s852 = scalar_lea.hbm %s5, %s851
          %s854 = sshll.u32 %s844, 4
          %s855 = int_to_ptr.vmem [resolvable:$true] %s854
          %857 = dma.vmem_to_hbm [thread:$0]  %s855, 16, %s852, %s842
        $region56: #{tpu_custom_call.1} parent=39 // pred_fallthru
          _
      $region40: #{tpu_custom_call.1} parent=5 // pred_fallthru
        _
      %p858 = scmp.le.s32.totalorder 2, %s17
      // Predicated region
      $region57: #{tpu_custom_call.1} parent=5 // pred_check
        %p859 = pneg %p858
      $region58: #{tpu_custom_call.1} parent=5 // pred_check_branch
        %861 = sbr.rel (%p859) target = $region60
      $region59: #{tpu_custom_call.1} parent=5 // pred_region
        %s862 = ssub.s32 %s17, 2
        // Predicated region
        $region61: #{tpu_custom_call.1} parent=59 // pred_check
          %p863 = pneg %p177
        $region62: #{tpu_custom_call.1} parent=59 // pred_check_branch
          %865 = sbr.rel (%p863) target = $region64
        $region63: #{tpu_custom_call.1} parent=59 // pred_region
          %s866 = sand.u32 %s162, 1
          %s867 = scalar_lea.sflag [#allocation7], %s866
          %s868 = sand.u32 %s162, 1
          %s869 = scalar_lea.vmem [#allocation8], %s868
          %870 = dma.done %s867, 16
        $region64: #{tpu_custom_call.1} parent=59 // pred_fallthru
          _
      $region60: #{tpu_custom_call.1} parent=5 // pred_fallthru
        _
    $region6: #{tpu_custom_call.1} parent=1 // loop_footer
      %s21 = sadd.s32 1, %s17
    $region7: #{tpu_custom_call.1} parent=1 // loop_footer_branch
      %16 = sbr.rel target = $region3
    $region8: #{tpu_custom_call.1} parent=1 // loop_exit
      _
    %871 = vsyncpa [#allocation6], 1
    %s872 = scalar_lea.sflag [#allocation6], 1
    %873 = vsyncpa %s872, 1
    %874 = vsyncpa [#allocation7], 1
    %s875 = scalar_lea.sflag [#allocation7], 1
    %876 = vsyncpa %s875, 1

</llo_original>
